<compile_context>
chip_gen: v7x
topology: tpu7x:2x2x1
jax: 0.10.0
libtpu: 0.0.40
codegen_flags: <defaults>
</compile_context>

<pallas_src>
import jax
import jax.numpy as jnp
from jax.experimental import pallas as pl
from jax.experimental.pallas import tpu as pltpu

CHAR_EMBED = 50     # self.char_embed_size in the module
KERNEL_SIZE = 5     # CNN kernel_size


def _round_up(x, m):
    return (x + m - 1) // m * m


def _pick_tiling(n_words, tile_cap):
    """Bound padding waste; force >=2 grid steps when possible (v7x 2xTC)."""
    n_tiles = max(1, -(-n_words // tile_cap))
    if n_tiles == 1 and n_words >= 16:
        n_tiles = 2
    tile_n = _round_up(-(-n_words // n_tiles), 8)
    return n_tiles, tile_n


def _char_cnn_highway_kernel(ids_ref, emb_ref, wconv_ref, bconv_ref,
                             whw_ref, bhw_ref, out_ref):
    # ids_ref  : (1, L, tile_n)     int32 char ids for this tile, time-major
    # emb_ref  : (Vp, Cp)           padded char-embedding table (resident)
    # wconv_ref: (K*Cp, Ep)         conv taps stacked for im2col, zero-padded
    # bconv_ref: (1, Ep)            f32
    # whw_ref  : (Ep, 2*Ep)         [W_proj | W_gate], transposed & padded
    # bhw_ref  : (1, 2*Ep)          f32 [b_proj | b_gate]
    # out_ref  : (tile_n, Ep)       f32
    _, L, tile_n = ids_ref.shape
    Vp, Cp = emb_ref.shape
    KCp, Ep = wconv_ref.shape
    K = KCp // Cp
    T = L - K + 1  # number of valid conv positions

    # ---- char embedding lookup as one_hot @ table (MXU, lane-dense Vp) ----
    ids_lt = ids_ref[0]                                            # (L, tile_n)
    iota_v = jax.lax.broadcasted_iota(jnp.int32, (L, tile_n, Vp), 2)
    onehot = (ids_lt[:, :, None] == iota_v).astype(emb_ref.dtype)  # (L, tile_n, Vp)
    onehot = onehot.reshape(L * tile_n, Vp)                        # free: tile_n % 8 == 0
    x = jnp.dot(onehot, emb_ref[...],
                preferred_element_type=jnp.float32)                # (L*tile_n, Cp) f32
    x = x.reshape(L, tile_n, Cp).astype(wconv_ref.dtype)           # time-major

    # ---- Conv1d as a single im2col matmul (no inter-tap VALU adds) ----
    # Leading-axis tap slices are free tile-aligned views.
    taps = [x[j:j + T].reshape(T * tile_n, Cp) for j in range(K)]
    im2col = jnp.concatenate(taps, axis=1)                         # (T*tile_n, K*Cp)
    conv = jnp.dot(im2col, wconv_ref[...],
                   preferred_element_type=jnp.float32)             # (T*tile_n, Ep)

    # max-pool over time (leading axis -> cheap vreg-wise max), then
    # hoisted bias + ReLU: relu(max_t s_t + b) == max_t relu(s_t + b).
    pooled = jnp.max(conv.reshape(T, tile_n, Ep), axis=0)          # (tile_n, Ep)
    h = jnp.maximum(pooled + bconv_ref[...], 0.0)                  # f32

    # ---- Highway: fused [proj | gate] matmul, combine as h + g*(p - h) ----
    hw = jnp.dot(h.astype(whw_ref.dtype), whw_ref[...],
                 preferred_element_type=jnp.float32) + bhw_ref[...]
    proj = jnp.maximum(hw[:, :Ep], 0.0)
    gate = jax.nn.sigmoid(hw[:, Ep:])
    out_ref[...] = (h + gate * (proj - h)).astype(out_ref.dtype)


def model_embeddings_forward(char_ids, emb_table,
                             w_conv, b_conv, w_proj, b_proj, w_gate, b_gate,
                             *, tile_n=256, compute_dtype=jnp.bfloat16):
    """char_ids: int32 (S, B, L) -> float32 (S, B, E).

    emb_table: (V, 50); w_conv: (K, 50, E); b_conv/b_proj/b_gate: (1, E);
    w_proj/w_gate: (E, E) stored transposed (out = h @ W).
    compute_dtype controls matmul-input precision (accumulation and all
    elementwise math stay f32, so bf16 is safe on v5e as well).
    """
    S, B, L = char_ids.shape
    V, C = emb_table.shape
    K, _, E = w_conv.shape
    N = S * B
    T = L - K + 1
    assert T >= 1, "max_word_length must be >= kernel_size"

    # Padded, lane/sublane-friendly dims.
    Ep = _round_up(E, 128)          # lane-dense output / highway width
    Cp = _round_up(C, 64)           # per-tap contraction depth (K*Cp im2col)
    Vp = _round_up(V, 128)          # lane-dense one-hot / lookup contraction

    n_tiles, tn = _pick_tiling(N, tile_n)
    Np = n_tiles * tn

    ids = char_ids.reshape(N, L).astype(jnp.int32)
    if Np != N:
        ids = jnp.pad(ids, ((0, Np - N), (0, 0)))   # pad rows -> char id 0, stripped later
    # time-major per-tile layout (n_tiles, L, tn): the BlockSpec's last two dims
    # equal the full array extents, so any 8-multiple tn is legal (zero waste).
    ids_t = ids.reshape(n_tiles, tn, L).transpose(0, 2, 1)

    dt = compute_dtype
    emb_p = jnp.zeros((Vp, Cp), dt).at[:V, :C].set(emb_table.astype(dt))
    wconv_p = (jnp.zeros((K, Cp, Ep), dt)
               .at[:, :C, :E].set(w_conv.astype(dt))
               .reshape(K * Cp, Ep))                                # im2col RHS
    bconv_p = jnp.zeros((1, Ep), jnp.float32).at[:, :E].set(
        b_conv.reshape(1, E).astype(jnp.float32))
    whw = jnp.zeros((Ep, 2 * Ep), dt)
    whw = whw.at[:E, :E].set(w_proj.astype(dt))
    whw = whw.at[:E, Ep:Ep + E].set(w_gate.astype(dt))
    bhw = jnp.zeros((1, 2 * Ep), jnp.float32)
    bhw = bhw.at[:, :E].set(b_proj.reshape(1, E).astype(jnp.float32))
    bhw = bhw.at[:, Ep:Ep + E].set(b_gate.reshape(1, E).astype(jnp.float32))

    out = pl.pallas_call(
        _char_cnn_highway_kernel,
        out_shape=jax.ShapeDtypeStruct((Np, Ep), jnp.float32),
        grid_spec=pltpu.PrefetchScalarGridSpec(
            num_scalar_prefetch=0,
            grid=(n_tiles,),
            in_specs=[
                pl.BlockSpec((1, L, tn), lambda i: (i, 0, 0)),        # char ids tile (time-major)
                pl.BlockSpec((Vp, Cp), lambda i: (0, 0)),             # embedding table (resident)
                pl.BlockSpec((K * Cp, Ep), lambda i: (0, 0)),         # im2col conv weights
                pl.BlockSpec((1, Ep), lambda i: (0, 0)),              # conv bias
                pl.BlockSpec((Ep, 2 * Ep), lambda i: (0, 0)),         # fused highway weights
                pl.BlockSpec((1, 2 * Ep), lambda i: (0, 0)),          # fused highway bias
            ],
            out_specs=pl.BlockSpec((tn, Ep), lambda i: (i, 0)),
        ),
        compiler_params=pltpu.CompilerParams(
            # Word-tile axis is embarrassingly parallel -> shards across TCs (v7x).
            dimension_semantics=("parallel",),
            # v5e's 16 MiB default scoped VMEM is tight for the f32 path at
            # tile 256; 48 MiB still leaves headroom on v7x's 64 MiB per TC.
            vmem_limit_bytes=48 << 20),
    )(ids_t, emb_p, wconv_p, bconv_p, whw, bhw)

    return out[:N, :E].reshape(S, B, E)


def _reference(char_ids, emb_table, w_conv, b_conv, w_proj, b_proj, w_gate, b_gate):
    S, B, L = char_ids.shape
    K, _, E = w_conv.shape
    N = S * B
    x = emb_table[char_ids.reshape(N, L)]                 # (N, L, C)
    T = L - K + 1
    conv = jnp.stack(
        [sum(x[:, t + j, :] @ w_conv[j] for j in range(K)) + b_conv[0]
         for t in range(T)], axis=1)                      # (N, T, E)
    h = jnp.max(jax.nn.relu(conv), axis=1)                # (N, E)
    proj = jax.nn.relu(h @ w_proj + b_proj[0])
    gate = jax.nn.sigmoid(h @ w_gate + b_gate[0])
    out = gate * proj + (1.0 - gate) * h
    return out.reshape(S, B, E)


if __name__ == "__main__":
    # Small shapes consistent with the module's forward.
    embed_size = 32          # word embedding size E
    vocab_chars = 30         # len(vocab.char2id)
    pad_idx = 0              # vocab.char2id['<pad>']
    sentence_length, batch_size, max_word_len = 8, 2, 8

    key = jax.random.PRNGKey(0)
    (k_emb, k_conv, k_bc, k_wp, k_bp, k_wg, k_bg,
     k_in, k_in2, k_in3) = jax.random.split(key, 10)

    # nn.Embedding(vocab_chars, 50, padding_idx=pad_idx)
    emb_table = 0.1 * jax.random.normal(k_emb, (vocab_chars, CHAR_EMBED), jnp.float32)
    emb_table = emb_table.at[pad_idx].set(0.0)

    # CNN: Conv1d(50, embed_size, kernel=5) -> stored as (K, C, E)
    w_conv = 0.1 * jax.random.normal(k_conv, (KERNEL_SIZE, CHAR_EMBED, embed_size), jnp.float32)
    b_conv = 0.1 * jax.random.normal(k_bc, (1, embed_size), jnp.float32)

    # Highway: two Linear(embed_size, embed_size), stored transposed (E, E)
    w_proj = 0.1 * jax.random.normal(k_wp, (embed_size, embed_size), jnp.float32)
    b_proj = 0.1 * jax.random.normal(k_bp, (1, embed_size), jnp.float32)
    w_gate = 0.1 * jax.random.normal(k_wg, (embed_size, embed_size), jnp.float32)
    b_gate = 0.1 * jax.random.normal(k_bg, (1, embed_size), jnp.float32)

    params = (emb_table, w_conv, b_conv, w_proj, b_proj, w_gate, b_gate)

    char_ids = jax.random.randint(
        k_in, (sentence_length, batch_size, max_word_len), 0, vocab_chars, jnp.int32)
    ref = _reference(char_ids, *params)

    # --- f32 path (tight check); N=16 -> 2 grid steps of 8 words ---
    out = jax.block_until_ready(model_embeddings_forward(
        char_ids, *params, compute_dtype=jnp.float32))
    assert out.shape == (sentence_length, batch_size, embed_size)
    assert jnp.allclose(out, ref, atol=1e-5, rtol=1e-5)

    # --- default bf16 matmul inputs / f32 accumulation ---
    out_bf16 = jax.block_until_ready(model_embeddings_forward(char_ids, *params))
    assert jnp.allclose(out_bf16, ref, atol=5e-2, rtol=5e-2)

    # --- multi-tile, zero-padding-waste path (N=272 -> 2 tiles of 136) ---
    char_ids2 = jax.random.randint(
        k_in2, (16, 17, max_word_len), 0, vocab_chars, jnp.int32)
    out2 = jax.block_until_ready(model_embeddings_forward(
        char_ids2, *params, compute_dtype=jnp.float32))
    ref2 = _reference(char_ids2, *params)
    assert jnp.allclose(out2, ref2, atol=1e-5, rtol=1e-5)

    # --- padded-N path (N=15 -> one tile of 16, one dead row stripped) ---
    char_ids3 = jax.random.randint(
        k_in3, (5, 3, max_word_len), 0, vocab_chars, jnp.int32)
    out3 = jax.block_until_ready(model_embeddings_forward(
        char_ids3, *params, compute_dtype=jnp.float32))
    ref3 = _reference(char_ids3, *params)
    assert jnp.allclose(out3, ref3, atol=1e-5, rtol=1e-5)

    print("KERNEL_OK")
</pallas_src>

<mosaic_0001>
module attributes {stable_mosaic.version = 11 : i64} {
  func.func @_char_cnn_highway_kernel(%arg0: i32, %arg1: memref<1x8x8xi32, #tpu.memory_space<vmem>>, %arg2: memref<128x64xf32, #tpu.memory_space<vmem>>, %arg3: memref<320x128xf32, #tpu.memory_space<vmem>>, %arg4: memref<1x128xf32, #tpu.memory_space<vmem>>, %arg5: memref<128x256xf32, #tpu.memory_space<vmem>>, %arg6: memref<1x256xf32, #tpu.memory_space<vmem>>, %arg7: memref<8x128xf32, #tpu.memory_space<vmem>>) attributes {dimension_semantics = [#tpu.dimension_semantics<parallel>], iteration_bounds = array<i64: 2>, scalar_prefetch = 0 : i64, scratch_operands = 0 : i64, tpu.core_type = #tpu.core_type<tc>, window_params = [{transform_indices = @transform_0, window_bounds = array<i64: 1, 8, 8>}, {pipeline_mode = #tpu.pipeline_mode<synchronous>, transform_indices = @transform_1, window_bounds = array<i64: 128, 64>}, {pipeline_mode = #tpu.pipeline_mode<synchronous>, transform_indices = @transform_2, window_bounds = array<i64: 320, 128>}, {pipeline_mode = #tpu.pipeline_mode<synchronous>, transform_indices = @transform_3, window_bounds = array<i64: 1, 128>}, {pipeline_mode = #tpu.pipeline_mode<synchronous>, transform_indices = @transform_4, window_bounds = array<i64: 128, 256>}, {pipeline_mode = #tpu.pipeline_mode<synchronous>, transform_indices = @transform_5, window_bounds = array<i64: 1, 256>}, {transform_indices = @transform_6, window_bounds = array<i64: 8, 128>}]} {
    %c0 = arith.constant 0 : index
    %c0_0 = arith.constant 0 : index
    %c0_1 = arith.constant 0 : index
    %0 = vector.load %arg1[%c0, %c0_0, %c0_1] : memref<1x8x8xi32, #tpu.memory_space<vmem>>, vector<1x8x8xi32>
    %1 = vector.shape_cast %0 : vector<1x8x8xi32> to vector<8x8xi32>
    %2 = tpu.iota {dimensions = array<i32: 2>} : vector<8x8x128xi32>
    %3 = vector.shape_cast %1 : vector<8x8xi32> to vector<8x8x1xi32>
    %4 = vector.broadcast %3 : vector<8x8x1xi32> to vector<8x8x128xi32>
    %5 = arith.cmpi eq, %4, %2 : vector<8x8x128xi32>
    %6 = arith.extui %5 : vector<8x8x128xi1> to vector<8x8x128xi32>
    %7 = arith.sitofp %6 : vector<8x8x128xi32> to vector<8x8x128xf32>
    %8 = vector.shape_cast %7 : vector<8x8x128xf32> to vector<64x128xf32>
    %c0_2 = arith.constant 0 : index
    %c0_3 = arith.constant 0 : index
    %9 = vector.load %arg2[%c0_2, %c0_3] : memref<128x64xf32, #tpu.memory_space<vmem>>, vector<128x64xf32>
    %cst = arith.constant dense<0.000000e+00> : vector<64x64xf32>
    %10 = tpu.matmul %8, %9, %cst {dimension_numbers = #tpu.dot_dimension_numbers<[1], [0], [0], [1], [0, 0, 1, 1], [], []>} : vector<64x128xf32>, vector<128x64xf32>, vector<64x64xf32> -> vector<64x64xf32>
    %11 = vector.shape_cast %10 : vector<64x64xf32> to vector<8x8x64xf32>
    %12 = vector.extract_strided_slice %11 {offsets = [0, 0, 0], sizes = [4, 8, 64], strides = [1, 1, 1]} : vector<8x8x64xf32> to vector<4x8x64xf32>
    %13 = vector.shape_cast %12 : vector<4x8x64xf32> to vector<32x64xf32>
    %14 = vector.extract_strided_slice %11 {offsets = [1, 0, 0], sizes = [4, 8, 64], strides = [1, 1, 1]} : vector<8x8x64xf32> to vector<4x8x64xf32>
    %15 = vector.shape_cast %14 : vector<4x8x64xf32> to vector<32x64xf32>
    %16 = vector.extract_strided_slice %11 {offsets = [2, 0, 0], sizes = [4, 8, 64], strides = [1, 1, 1]} : vector<8x8x64xf32> to vector<4x8x64xf32>
    %17 = vector.shape_cast %16 : vector<4x8x64xf32> to vector<32x64xf32>
    %18 = vector.extract_strided_slice %11 {offsets = [3, 0, 0], sizes = [4, 8, 64], strides = [1, 1, 1]} : vector<8x8x64xf32> to vector<4x8x64xf32>
    %19 = vector.shape_cast %18 : vector<4x8x64xf32> to vector<32x64xf32>
    %20 = vector.extract_strided_slice %11 {offsets = [4, 0, 0], sizes = [4, 8, 64], strides = [1, 1, 1]} : vector<8x8x64xf32> to vector<4x8x64xf32>
    %21 = vector.shape_cast %20 : vector<4x8x64xf32> to vector<32x64xf32>
    %22 = tpu.concatenate %13, %15, %17, %19, %21 in 1 : vector<32x64xf32>, vector<32x64xf32>, vector<32x64xf32>, vector<32x64xf32>, vector<32x64xf32> -> vector<32x320xf32>
    %c0_4 = arith.constant 0 : index
    %c0_5 = arith.constant 0 : index
    %23 = vector.load %arg3[%c0_4, %c0_5] : memref<320x128xf32, #tpu.memory_space<vmem>>, vector<320x128xf32>
    %cst_6 = arith.constant dense<0.000000e+00> : vector<32x128xf32>
    %24 = tpu.matmul %22, %23, %cst_6 {dimension_numbers = #tpu.dot_dimension_numbers<[1], [0], [0], [1], [0, 0, 1, 1], [], []>} : vector<32x320xf32>, vector<320x128xf32>, vector<32x128xf32> -> vector<32x128xf32>
    %25 = vector.shape_cast %24 : vector<32x128xf32> to vector<4x8x128xf32>
    %cst_7 = arith.constant dense<0xFF800000> : vector<8x128xf32>
    %26 = vector.multi_reduction <maximumf>, %25, %cst_7 [0] : vector<4x8x128xf32> to vector<8x128xf32>
    %c0_8 = arith.constant 0 : index
    %c0_9 = arith.constant 0 : index
    %27 = vector.load %arg4[%c0_8, %c0_9] : memref<1x128xf32, #tpu.memory_space<vmem>>, vector<1x128xf32>
    %28 = vector.broadcast %27 : vector<1x128xf32> to vector<8x128xf32>
    %29 = arith.addf %26, %28 : vector<8x128xf32>
    %cst_10 = arith.constant 0.000000e+00 : f32
    %30 = vector.broadcast %cst_10 : f32 to vector<8x128xf32>
    %31 = arith.maximumf %29, %30 : vector<8x128xf32>
    %c0_11 = arith.constant 0 : index
    %c0_12 = arith.constant 0 : index
    %32 = vector.load %arg5[%c0_11, %c0_12] : memref<128x256xf32, #tpu.memory_space<vmem>>, vector<128x256xf32>
    %cst_13 = arith.constant dense<0.000000e+00> : vector<8x256xf32>
    %33 = tpu.matmul %31, %32, %cst_13 {dimension_numbers = #tpu.dot_dimension_numbers<[1], [0], [0], [1], [0, 0, 1, 1], [], []>} : vector<8x128xf32>, vector<128x256xf32>, vector<8x256xf32> -> vector<8x256xf32>
    %c0_14 = arith.constant 0 : index
    %c0_15 = arith.constant 0 : index
    %34 = vector.load %arg6[%c0_14, %c0_15] : memref<1x256xf32, #tpu.memory_space<vmem>>, vector<1x256xf32>
    %35 = vector.broadcast %34 : vector<1x256xf32> to vector<8x256xf32>
    %36 = arith.addf %33, %35 : vector<8x256xf32>
    %37 = vector.extract_strided_slice %36 {offsets = [0, 0], sizes = [8, 128], strides = [1, 1]} : vector<8x256xf32> to vector<8x128xf32>
    %cst_16 = arith.constant 0.000000e+00 : f32
    %38 = vector.broadcast %cst_16 : f32 to vector<8x128xf32>
    %39 = arith.maximumf %37, %38 : vector<8x128xf32>
    %40 = vector.extract_strided_slice %36 {offsets = [0, 128], sizes = [8, 128], strides = [1, 1]} : vector<8x256xf32> to vector<8x128xf32>
    %41 = arith.negf %40 : vector<8x128xf32>
    %42 = math.exp %41 : vector<8x128xf32>
    %cst_17 = arith.constant 1.000000e+00 : f32
    %43 = vector.broadcast %cst_17 : f32 to vector<8x128xf32>
    %44 = arith.addf %43, %42 : vector<8x128xf32>
    %45 = arith.divf %43, %44 : vector<8x128xf32>
    %46 = arith.subf %39, %31 : vector<8x128xf32>
    %47 = arith.mulf %45, %46 : vector<8x128xf32>
    %48 = arith.addf %31, %47 : vector<8x128xf32>
    %c0_18 = arith.constant 0 : index
    %c0_19 = arith.constant 0 : index
    %49 = vector.load %arg7[%c0_18, %c0_19] : memref<8x128xf32, #tpu.memory_space<vmem>>, vector<8x128xf32>
    tpu.vector_store %arg7[%c0_18, %c0_19], %48 {strides = array<i32>} : memref<8x128xf32, #tpu.memory_space<vmem>>, vector<8x128xf32>,
    return
  }
  func.func @transform_0(%arg0: i32) -> (i32, i32, i32) {
    %c0_i32 = arith.constant 0 : i32
    %c0_i32_0 = arith.constant 0 : i32
    %c0_i32_1 = arith.constant 0 : i32
    return %arg0, %c0_i32, %c0_i32_0 : i32, i32, i32
  }
  func.func @transform_1(%arg0: i32) -> (i32, i32) {
    %c0_i32 = arith.constant 0 : i32
    %c0_i32_0 = arith.constant 0 : i32
    %c0_i32_1 = arith.constant 0 : i32
    return %c0_i32, %c0_i32_0 : i32, i32
  }
  func.func @transform_2(%arg0: i32) -> (i32, i32) {
    %c0_i32 = arith.constant 0 : i32
    %c0_i32_0 = arith.constant 0 : i32
    %c0_i32_1 = arith.constant 0 : i32
    return %c0_i32, %c0_i32_0 : i32, i32
  }
  func.func @transform_3(%arg0: i32) -> (i32, i32) {
    %c0_i32 = arith.constant 0 : i32
    %c0_i32_0 = arith.constant 0 : i32
    %c0_i32_1 = arith.constant 0 : i32
    return %c0_i32, %c0_i32_0 : i32, i32
  }
  func.func @transform_4(%arg0: i32) -> (i32, i32) {
    %c0_i32 = arith.constant 0 : i32
    %c0_i32_0 = arith.constant 0 : i32
    %c0_i32_1 = arith.constant 0 : i32
    return %c0_i32, %c0_i32_0 : i32, i32
  }
  func.func @transform_5(%arg0: i32) -> (i32, i32) {
    %c0_i32 = arith.constant 0 : i32
    %c0_i32_0 = arith.constant 0 : i32
    %c0_i32_1 = arith.constant 0 : i32
    return %c0_i32, %c0_i32_0 : i32, i32
  }
  func.func @transform_6(%arg0: i32) -> (i32, i32) {
    %c0_i32 = arith.constant 0 : i32
    %c0_i32_0 = arith.constant 0 : i32
    return %arg0, %c0_i32 : i32, i32
  }
}

</mosaic_0001>

<llo_original>
// kernel: tpu_custom_call.1
$region0: #{tpu_custom_call.1}
  #allocation0 [shape = 'u32[]', space=smem, size = 0x4, offset = 0x4, fixed_abs, tag = 'smem constant byte address 0x4 - core index']
  #allocation1 [shape = 'u32[144,128]{1,0:T(1,128)}', space=vmem, size = 0x12000, scoped, tag = 'internal scratch']
  %s0 = inlined_call_operand.vmem [shape: s32[2,8,8], index: 0, kind: input, shape index: {}]
  %s1 = inlined_call_operand.vmem [shape: f32[128,64], index: 1, kind: input, shape index: {}]
  %s2 = inlined_call_operand.hbm [shape: f32[320,128], index: 2, kind: input, shape index: {}]
  %s3 = inlined_call_operand.vmem [shape: f32[1,128], index: 3, kind: input, shape index: {}]
  %s4 = inlined_call_operand.hbm [shape: f32[128,256], index: 4, kind: input, shape index: {}]
  %s5 = inlined_call_operand.vmem [shape: f32[1,256], index: 5, kind: input, shape index: {}]
  %s6 = inlined_call_operand.hbm [shape: f32[16,128], index: 6, kind: output, shape index: {}]
  %s7 = sld [smem:[#allocation0]]
  $region65: #{tpu_custom_call.1} parent=0
    _
  %s9 = ssub.s32 1, %s7
  %s10 = scalar_select 0, %s9, %s7
  $region1: #{tpu_custom_call.1} parent=0
    #allocation2 [shape = 'u8[163840]{0}', space=vmem, size = 0x28000, scoped, tag = 'input window, operand 2, single buffered']
    #allocation3 [shape = 's32[2]{0}', space=sflag, size = 0x8, scoped, tag = 'scoped memory for tpu_custom_call.1']
    #allocation4 [shape = 's32[2]{0}', space=sflag, size = 0x8, scoped, tag = 'scoped memory for tpu_custom_call.1']
    #allocation5 [shape = 'u8[131072]{0}', space=vmem, size = 0x20000, scoped, tag = 'input window, operand 4, single buffered']
    #allocation6 [shape = 's32[1]{0}', space=sflag, size = 0x4, scoped, tag = 'scoped memory for tpu_custom_call.1']
    #allocation7 [shape = 'u8[8192]{0}', space=vmem, size = 0x2000, scoped, tag = 'output window, operand 0']
    %11 = vsyncpa [#allocation3], 0
    %12 = vsyncpa [#allocation6], 0
    %13 = vsyncpa [#allocation4], 0
    %s14 = scalar_lea.sflag [#allocation4], 1
    %15 = vsyncpa %s14, 0
    loop: start=0, step=1, limit=4
    $region2: #{tpu_custom_call.1} parent=1 // loop_pre_header
      _
    $region3: #{tpu_custom_call.1} parent=1 // loop_header
      %s17 = sphi 0, %s21
      %p18 = scmp.ge.s32.totalorder %s17, 4
      %s27 = sphi 0, %s29
      %s30 = sphi 0, %s27
      %s31 = sphi 0, %s30
      %s47 = sphi 0, %s31
      %s51 = sphi 0, %s51
      %s53 = sphi 0, %s51
      %s54 = sphi 0, %s53
      %s68 = sphi 0, %s54
      %s72 = sphi 0, %s72
      %s74 = sphi 0, %s72
      %s75 = sphi 0, %s74
      %s89 = sphi 0, %s75
      %s93 = sphi 0, %s93
      %s95 = sphi 0, %s93
      %s96 = sphi 0, %s95
      %s110 = sphi 0, %s96
      %s114 = sphi 0, %s114
      %s116 = sphi 0, %s114
      %s117 = sphi 0, %s116
      %s131 = sphi 0, %s117
      %s135 = sphi 0, %s135
      %s137 = sphi 0, %s135
      %s138 = sphi 0, %s137
      %s152 = sphi 0, %s138
      %s158 = sphi 0, %s160
      %s161 = sphi 0, %s158
      %s162 = sphi 0, %s161
      %s178 = sphi 0, %s162
    $region4: #{tpu_custom_call.1} parent=1 // loop_header_branch
      %20 = sbr.rel (%p18) target = $region8
    $region5: #{tpu_custom_call.1} parent=1 // loop_body
      %s22 = ssub.s32 %s17, 1
      %s23 = ssub.s32 %s17, 2
      %s24 = sadd.s32 %s17, 1
      %s25 = ssub.s32 %s17, %s24
      %p26 = scmp.eq.s32.totalorder %s25, 0
      %s28 = sadd.s32 %s27, 1
      %s29 = scalar_select %p26, %s27, %s28
      %p32 = pneg %p26
      %p33 = scmp.eq.s32.totalorder %s17, 1
      %p34 = por %p32, %p33
      %p35 = scmp.ne.s32.totalorder %s27, %s30
      %p36 = scmp.eq.s32.totalorder %s17, 0
      %p37 = por %p35, %p36
      %p38 = scmp.ne.s32.totalorder %s27, %s30
      %p39 = scmp.eq.s32.totalorder %s22, 1
      %p40 = por %p38, %p39
      %p41 = scmp.ne.s32.totalorder %s30, %s31
      %p42 = scmp.eq.s32.totalorder %s22, 0
      %p43 = por %p41, %p42
      %p44 = scmp.ne.s32.totalorder %s30, %s31
      %p45 = scmp.eq.s32.totalorder %s23, 1
      %p46 = por %p44, %p45
      %p48 = scmp.ne.s32.totalorder %s31, %s47
      %p49 = scmp.eq.s32.totalorder %s23, 0
      %p50 = por %p48, %p49
      %s52 = sadd.s32 %s51, 1
      %p55 = scmp.eq.s32.totalorder %s17, 1
      %p56 = scmp.ne.s32.totalorder %s51, %s53
      %p57 = scmp.eq.s32.totalorder %s17, 0
      %p58 = por %p56, %p57
      %p59 = scmp.ne.s32.totalorder %s51, %s53
      %p60 = scmp.eq.s32.totalorder %s22, 1
      %p61 = por %p59, %p60
      %p62 = scmp.ne.s32.totalorder %s53, %s54
      %p63 = scmp.eq.s32.totalorder %s22, 0
      %p64 = por %p62, %p63
      %p65 = scmp.ne.s32.totalorder %s53, %s54
      %p66 = scmp.eq.s32.totalorder %s23, 1
      %p67 = por %p65, %p66
      %p69 = scmp.ne.s32.totalorder %s54, %s68
      %p70 = scmp.eq.s32.totalorder %s23, 0
      %p71 = por %p69, %p70
      %s73 = sadd.s32 %s72, 1
      %p76 = scmp.eq.s32.totalorder %s17, 1
      %p77 = scmp.ne.s32.totalorder %s72, %s74
      %p78 = scmp.eq.s32.totalorder %s17, 0
      %p79 = por %p77, %p78
      %p80 = scmp.ne.s32.totalorder %s72, %s74
      %p81 = scmp.eq.s32.totalorder %s22, 1
      %p82 = por %p80, %p81
      %p83 = scmp.ne.s32.totalorder %s74, %s75
      %p84 = scmp.eq.s32.totalorder %s22, 0
      %p85 = por %p83, %p84
      %p86 = scmp.ne.s32.totalorder %s74, %s75
      %p87 = scmp.eq.s32.totalorder %s23, 1
      %p88 = por %p86, %p87
      %p90 = scmp.ne.s32.totalorder %s75, %s89
      %p91 = scmp.eq.s32.totalorder %s23, 0
      %p92 = por %p90, %p91
      %s94 = sadd.s32 %s93, 1
      %p97 = scmp.eq.s32.totalorder %s17, 1
      %p98 = scmp.ne.s32.totalorder %s93, %s95
      %p99 = scmp.eq.s32.totalorder %s17, 0
      %p100 = por %p98, %p99
      %p101 = scmp.ne.s32.totalorder %s93, %s95
      %p102 = scmp.eq.s32.totalorder %s22, 1
      %p103 = por %p101, %p102
      %p104 = scmp.ne.s32.totalorder %s95, %s96
      %p105 = scmp.eq.s32.totalorder %s22, 0
      %p106 = por %p104, %p105
      %p107 = scmp.ne.s32.totalorder %s95, %s96
      %p108 = scmp.eq.s32.totalorder %s23, 1
      %p109 = por %p107, %p108
      %p111 = scmp.ne.s32.totalorder %s96, %s110
      %p112 = scmp.eq.s32.totalorder %s23, 0
      %p113 = por %p111, %p112
      %s115 = sadd.s32 %s114, 1
      %p118 = scmp.eq.s32.totalorder %s17, 1
      %p119 = scmp.ne.s32.totalorder %s114, %s116
      %p120 = scmp.eq.s32.totalorder %s17, 0
      %p121 = por %p119, %p120
      %p122 = scmp.ne.s32.totalorder %s114, %s116
      %p123 = scmp.eq.s32.totalorder %s22, 1
      %p124 = por %p122, %p123
      %p125 = scmp.ne.s32.totalorder %s116, %s117
      %p126 = scmp.eq.s32.totalorder %s22, 0
      %p127 = por %p125, %p126
      %p128 = scmp.ne.s32.totalorder %s116, %s117
      %p129 = scmp.eq.s32.totalorder %s23, 1
      %p130 = por %p128, %p129
      %p132 = scmp.ne.s32.totalorder %s117, %s131
      %p133 = scmp.eq.s32.totalorder %s23, 0
      %p134 = por %p132, %p133
      %s136 = sadd.s32 %s135, 1
      %p139 = scmp.eq.s32.totalorder %s17, 1
      %p140 = scmp.ne.s32.totalorder %s135, %s137
      %p141 = scmp.eq.s32.totalorder %s17, 0
      %p142 = por %p140, %p141
      %p143 = scmp.ne.s32.totalorder %s135, %s137
      %p144 = scmp.eq.s32.totalorder %s22, 1
      %p145 = por %p143, %p144
      %p146 = scmp.ne.s32.totalorder %s137, %s138
      %p147 = scmp.eq.s32.totalorder %s22, 0
      %p148 = por %p146, %p147
      %p149 = scmp.ne.s32.totalorder %s137, %s138
      %p150 = scmp.eq.s32.totalorder %s23, 1
      %p151 = por %p149, %p150
      %p153 = scmp.ne.s32.totalorder %s138, %s152
      %p154 = scmp.eq.s32.totalorder %s23, 0
      %p155 = por %p153, %p154
      %s156 = ssub.s32 %s17, %s24
      %p157 = scmp.eq.s32.totalorder %s156, 0
      %s159 = sadd.s32 %s158, 1
      %s160 = scalar_select %p157, %s158, %s159
      %p163 = pneg %p157
      %p164 = scmp.eq.s32.totalorder %s17, 1
      %p165 = por %p163, %p164
      %p166 = scmp.ne.s32.totalorder %s158, %s161
      %p167 = scmp.eq.s32.totalorder %s17, 0
      %p168 = por %p166, %p167
      %p169 = scmp.ne.s32.totalorder %s158, %s161
      %p170 = scmp.eq.s32.totalorder %s22, 1
      %p171 = por %p169, %p170
      %p172 = scmp.ne.s32.totalorder %s161, %s162
      %p173 = scmp.eq.s32.totalorder %s22, 0
      %p174 = por %p172, %p173
      %p175 = scmp.ne.s32.totalorder %s161, %s162
      %p176 = scmp.eq.s32.totalorder %s23, 1
      %p177 = por %p175, %p176
      %p179 = scmp.ne.s32.totalorder %s162, %s178
      %p180 = scmp.eq.s32.totalorder %s23, 0
      %p181 = por %p179, %p180
      %p182 = scmp.le.s32.totalorder 1, %s17
      %p183 = scmp.lt.s32.totalorder %s17, 3
      %p184 = pnand %p182, %p183
      %p185 = pneg %p184
      // Predicated region
      $region9: #{tpu_custom_call.1} parent=5 // pred_check
        _
      $region10: #{tpu_custom_call.1} parent=5 // pred_check_branch
        %187 = sbr.rel (%p184) target = $region12
      $region11: #{tpu_custom_call.1} parent=5 // pred_region
        %s188 = ssub.s32 %s17, 1
        // Predicated region
        $region13: #{tpu_custom_call.1} parent=11 // pred_check
          %p189 = pneg %p64
        $region14: #{tpu_custom_call.1} parent=11 // pred_check_branch
          %191 = sbr.rel (%p189) target = $region16
        $region15: #{tpu_custom_call.1} parent=11 // pred_region
          _
        $region16: #{tpu_custom_call.1} parent=11 // pred_fallthru
          _
        // Predicated region
        $region17: #{tpu_custom_call.1} parent=11 // pred_check
          %p192 = pneg %p85
        $region18: #{tpu_custom_call.1} parent=11 // pred_check_branch
          %194 = sbr.rel (%p192) target = $region20
        $region19: #{tpu_custom_call.1} parent=11 // pred_region
          %s196 = ssub.s32 5120, 5120
          %197 = vsyncadd [#allocation3], %s196
          %s198 = sshll.u32 [#allocation2], 4
          %s199 = int_to_ptr.vmem [resolvable:$true] %s198
          %204 = dma.hbm_to_vmem [thread:$0]  %s2, 5120, %s199, [#allocation3], 128, 128, 8
        $region20: #{tpu_custom_call.1} parent=11 // pred_fallthru
          _
        // Predicated region
        $region21: #{tpu_custom_call.1} parent=11 // pred_check
          %p205 = pneg %p106
        $region22: #{tpu_custom_call.1} parent=11 // pred_check_branch
          %207 = sbr.rel (%p205) target = $region24
        $region23: #{tpu_custom_call.1} parent=11 // pred_region
          _
        $region24: #{tpu_custom_call.1} parent=11 // pred_fallthru
          _
        // Predicated region
        $region25: #{tpu_custom_call.1} parent=11 // pred_check
          %p208 = pneg %p127
        $region26: #{tpu_custom_call.1} parent=11 // pred_check_branch
          %210 = sbr.rel (%p208) target = $region28
        $region27: #{tpu_custom_call.1} parent=11 // pred_region
          %s212 = ssub.s32 4096, 4096
          %213 = vsyncadd [#allocation6], %s212
          %s214 = sshll.u32 [#allocation5], 4
          %s215 = int_to_ptr.vmem [resolvable:$true] %s214
          %220 = dma.hbm_to_vmem [thread:$0]  %s4, 4096, %s215, [#allocation6], 256, 256, 16
        $region28: #{tpu_custom_call.1} parent=11 // pred_fallthru
          _
        // Predicated region
        $region29: #{tpu_custom_call.1} parent=11 // pred_check
          %p221 = pneg %p148
        $region30: #{tpu_custom_call.1} parent=11 // pred_check_branch
          %223 = sbr.rel (%p221) target = $region32
        $region31: #{tpu_custom_call.1} parent=11 // pred_region
          _
        $region32: #{tpu_custom_call.1} parent=11 // pred_fallthru
          _
      $region12: #{tpu_custom_call.1} parent=5 // pred_fallthru
        _
      %p224 = scmp.lt.s32.totalorder %s17, 2
      // Predicated region
      $region33: #{tpu_custom_call.1} parent=5 // pred_check
        %p225 = pneg %p224
      $region34: #{tpu_custom_call.1} parent=5 // pred_check_branch
        %227 = sbr.rel (%p225) target = $region36
      $region35: #{tpu_custom_call.1} parent=5 // pred_region
        // Predicated region
        $region37: #{tpu_custom_call.1} parent=35 // pred_check
          %p228 = pneg %p37
        $region38: #{tpu_custom_call.1} parent=35 // pred_check_branch
          %230 = sbr.rel (%p228) target = $region40
        $region39: #{tpu_custom_call.1} parent=35 // pred_region
          %p231 = scmp.lt.s32.totalorder %s17, 1
          %s232 = scalar_select %p231, %s17, 1
          %s233 = smul.addr %s232, 8
          %s234 = scalar_lea.vmem %s0, %s233
        $region40: #{tpu_custom_call.1} parent=35 // pred_fallthru
          _
      $region36: #{tpu_custom_call.1} parent=5 // pred_fallthru
        _
      %p235 = scmp.le.s32.totalorder 1, %s17
      %p236 = scmp.lt.s32.totalorder %s17, 3
      %p237 = pnand %p235, %p236
      %p238 = pneg %p237
      // Predicated region
      $region41: #{tpu_custom_call.1} parent=5 // pred_check
        _
      $region42: #{tpu_custom_call.1} parent=5 // pred_check_branch
        %240 = sbr.rel (%p237) target = $region44
      $region43: #{tpu_custom_call.1} parent=5 // pred_region
        %s241 = ssub.s32 %s17, 1
        // Predicated region
        $region45: #{tpu_custom_call.1} parent=43 // pred_check
          %p242 = pneg %p85
        $region46: #{tpu_custom_call.1} parent=43 // pred_check_branch
          %244 = sbr.rel (%p242) target = $region48
        $region47: #{tpu_custom_call.1} parent=43 // pred_region
          %245 = dma.done [#allocation3], 5120
        $region48: #{tpu_custom_call.1} parent=43 // pred_fallthru
          _
        // Predicated region
        $region49: #{tpu_custom_call.1} parent=43 // pred_check
          %p246 = pneg %p127
        $region50: #{tpu_custom_call.1} parent=43 // pred_check_branch
          %248 = sbr.rel (%p246) target = $region52
        $region51: #{tpu_custom_call.1} parent=43 // pred_region
          %249 = dma.done [#allocation6], 4096
        $region52: #{tpu_custom_call.1} parent=43 // pred_fallthru
          _
        %p250 = scmp.lt.s32.totalorder %s22, 1
        %s251 = scalar_select %p250, %s22, 1
        %s252 = smul.addr %s251, 8
        %s253 = scalar_lea.vmem %s0, %s252
        %p254 = pneg %p43
        %p255 = pneg %p40
        %p256 = pneg %p64
        %p257 = pneg %p61
        %p258 = pneg %p85
        %p259 = pneg %p82
        %p260 = pneg %p106
        %p261 = pneg %p103
        %p262 = pneg %p127
        %p263 = pneg %p124
        %p264 = pneg %p148
        %p265 = pneg %p145
        %p266 = pneg %p174
        %p267 = pneg %p171
        %s268 = sand.u32 %s161, 1
        %s269 = scalar_lea.sflag [#allocation4], %s268
        %s270 = sand.u32 %s161, 1
        %s271 = smul.addr %s270, 8
        %s272 = scalar_lea.vmem [#allocation7], %s271
        %p273 = scmp.lt.s32.totalorder %s22, 1
        %s274 = scalar_select %p273, %s22, 1
        %s275 = smul.addr %s274, 8
        %s276 = scalar_lea.vmem %s0, %s275
        %v277 = vld [vmem:[%s276] sm:$0xff]
        %v278 = vlaneseq
        %v279 = vand.u32 %v278, 127
        %v280 = vlaneseq
        %v281 = vshrl.u32 %v280, 7
        %v282 = vsub.s32 0, %v281
        %v283 = vrot.slane %v277, %v282
        %285 = vbcast.lane.b32.xlu0 %v283, 256
        %v286 = vpop.permute.xlu0 %285
        %v287 = vlaneseq
        %v288 = vshrl.u32 %v287, 7
        %v289 = vsub.s32 1, %v288
        %v290 = vrot.slane %v277, %v289
        %292 = vbcast.lane.b32.xlu0 %v290, 256
        %v293 = vpop.permute.xlu0 %292
        %v294 = vlaneseq
        %v295 = vshrl.u32 %v294, 7
        %v296 = vsub.s32 2, %v295
        %v297 = vrot.slane %v277, %v296
        %299 = vbcast.lane.b32.xlu0 %v297, 256
        %v300 = vpop.permute.xlu0 %299
        %v301 = vlaneseq
        %v302 = vshrl.u32 %v301, 7
        %v303 = vsub.s32 3, %v302
        %v304 = vrot.slane %v277, %v303
        %306 = vbcast.lane.b32.xlu0 %v304, 256
        %v307 = vpop.permute.xlu0 %306
        %v308 = vlaneseq
        %v309 = vshrl.u32 %v308, 7
        %v310 = vsub.s32 4, %v309
        %v311 = vrot.slane %v277, %v310
        %313 = vbcast.lane.b32.xlu0 %v311, 256
        %v314 = vpop.permute.xlu0 %313
        %v315 = vlaneseq
        %v316 = vshrl.u32 %v315, 7
        %v317 = vsub.s32 5, %v316
        %v318 = vrot.slane %v277, %v317
        %320 = vbcast.lane.b32.xlu0 %v318, 256
        %v321 = vpop.permute.xlu0 %320
        %v322 = vlaneseq
        %v323 = vshrl.u32 %v322, 7
        %v324 = vsub.s32 6, %v323
        %v325 = vrot.slane %v277, %v324
        %327 = vbcast.lane.b32.xlu0 %v325, 256
        %v328 = vpop.permute.xlu0 %327
        %v329 = vlaneseq
        %v330 = vshrl.u32 %v329, 7
        %v331 = vsub.s32 7, %v330
        %v332 = vrot.slane %v277, %v331
        %334 = vbcast.lane.b32.xlu0 %v332, 256
        %v335 = vpop.permute.xlu0 %334
        %vm336 = vcmp.eq.s32.totalorder %v286, %v279
        %vm337 = vcmp.eq.s32.totalorder %v293, %v279
        %vm338 = vcmp.eq.s32.totalorder %v300, %v279
        %vm339 = vcmp.eq.s32.totalorder %v307, %v279
        %vm340 = vcmp.eq.s32.totalorder %v314, %v279
        %vm341 = vcmp.eq.s32.totalorder %v321, %v279
        %vm342 = vcmp.eq.s32.totalorder %v328, %v279
        %vm343 = vcmp.eq.s32.totalorder %v335, %v279
        %v344 = vsel %vm336, 1, 0
        %v345 = vsel %vm337, 1, 0
        %v346 = vsel %vm338, 1, 0
        %v347 = vsel %vm339, 1, 0
        %v348 = vsel %vm340, 1, 0
        %v349 = vsel %vm341, 1, 0
        %v350 = vsel %vm342, 1, 0
        %v351 = vsel %vm343, 1, 0
        %v352 = vcvt.s32.f32 %v344
        %v353 = vcvt.s32.f32 %v345
        %v354 = vcvt.s32.f32 %v346
        %v355 = vcvt.s32.f32 %v347
        %v356 = vcvt.s32.f32 %v348
        %v357 = vcvt.s32.f32 %v349
        %v358 = vcvt.s32.f32 %v350
        %v359 = vcvt.s32.f32 %v351
        %v360 = vld [vmem:[%s1] sm:$0xff]
        %v361 = vld [vmem:[%s1 + $0x8] sm:$0xff]
        %v362 = vld [vmem:[%s1 + $0x10] sm:$0xff]
        %v363 = vld [vmem:[%s1 + $0x18] sm:$0xff]
        %v364 = vld [vmem:[%s1 + $0x20] sm:$0xff]
        %v365 = vld [vmem:[%s1 + $0x28] sm:$0xff]
        %v366 = vld [vmem:[%s1 + $0x30] sm:$0xff]
        %v367 = vld [vmem:[%s1 + $0x38] sm:$0xff]
        %v368 = vld [vmem:[%s1 + $0x40] sm:$0xff]
        %v369 = vld [vmem:[%s1 + $0x48] sm:$0xff]
        %v370 = vld [vmem:[%s1 + $0x50] sm:$0xff]
        %v371 = vld [vmem:[%s1 + $0x58] sm:$0xff]
        %v372 = vld [vmem:[%s1 + $0x60] sm:$0xff]
        %v373 = vld [vmem:[%s1 + $0x68] sm:$0xff]
        %v374 = vld [vmem:[%s1 + $0x70] sm:$0xff]
        %v375 = vld [vmem:[%s1 + $0x78] sm:$0xff]
        %376 = vmatprep.subr.mxu0 0.0
        %377 = vmatpush1.msra.mxu0 %v360
        %378 = vmatprep.subr.mxu0 0.0
        %379 = vmatpush1.msra.mxu0 %v361
        %380 = vmatprep.subr.mxu0 0.0
        %381 = vmatpush1.msra.mxu0 %v362
        %382 = vmatprep.subr.mxu0 0.0
        %383 = vmatpush1.msra.mxu0 %v363
        %384 = vmatprep.subr.mxu0 0.0
        %385 = vmatpush1.msra.mxu0 %v364
        %386 = vmatprep.subr.mxu0 0.0
        %387 = vmatpush1.msra.mxu0 %v365
        %388 = vmatprep.subr.mxu0 0.0
        %389 = vmatpush1.msra.mxu0 %v366
        %390 = vmatprep.subr.mxu0 0.0
        %391 = vmatpush1.msra.mxu0 %v367
        %392 = vmatprep.subr.mxu0 0.0
        %393 = vmatpush1.msra.mxu0 %v368
        %394 = vmatprep.subr.mxu0 0.0
        %395 = vmatpush1.msra.mxu0 %v369
        %396 = vmatprep.subr.mxu0 0.0
        %397 = vmatpush1.msra.mxu0 %v370
        %398 = vmatprep.subr.mxu0 0.0
        %399 = vmatpush1.msra.mxu0 %v371
        %400 = vmatprep.subr.mxu0 0.0
        %401 = vmatpush1.msra.mxu0 %v372
        %402 = vmatprep.subr.mxu0 0.0
        %403 = vmatpush1.msra.mxu0 %v373
        %404 = vmatprep.subr.mxu0 0.0
        %405 = vmatpush1.msra.mxu0 %v374
        %406 = vmatprep.subr.mxu0 0.0
        %407 = vmatpush1.msra.mxu0 %v375
        %408 = vmatprep.subr.mxu0 0.0
        %409 = vmatpush1.msra.mxu0 0.0
        %410 = vmatprep.subr.mxu0 0.0
        %411 = vmatpush1.msra.mxu0 0.0
        %412 = vmatprep.subr.mxu0 0.0
        %413 = vmatpush1.msra.mxu0 0.0
        %414 = vmatprep.subr.mxu0 0.0
        %415 = vmatpush1.msra.mxu0 0.0
        %416 = vmatprep.subr.mxu0 0.0
        %417 = vmatpush1.msra.mxu0 0.0
        %418 = vmatprep.subr.mxu0 0.0
        %419 = vmatpush1.msra.mxu0 0.0
        %420 = vmatprep.subr.mxu0 0.0
        %421 = vmatpush1.msra.mxu0 0.0
        %422 = vmatprep.subr.mxu0 0.0
        %423 = vmatpush1.msra.mxu0 0.0
        %424 = vmatprep.subr.mxu0 0.0
        %425 = vmatpush1.msra.mxu0 0.0
        %426 = vmatprep.subr.mxu0 0.0
        %427 = vmatpush1.msra.mxu0 0.0
        %428 = vmatprep.subr.mxu0 0.0
        %429 = vmatpush1.msra.mxu0 0.0
        %430 = vmatprep.subr.mxu0 0.0
        %431 = vmatpush1.msra.mxu0 0.0
        %432 = vmatprep.subr.mxu0 0.0
        %433 = vmatpush1.msra.mxu0 0.0
        %434 = vmatprep.subr.mxu0 0.0
        %435 = vmatpush1.msra.mxu0 0.0
        %436 = vmatprep.subr.mxu0 0.0
        %437 = vmatpush1.msra.mxu0 0.0
        %438 = vmatprep.subr.mxu0 0.0
        %439 = vmatpush1.msra.mxu0 0.0
        %440 = vmatprep.mubr.f32.mxu0 0.0
        %441 = vmatmul.mubr.f32.gmra.mrb[0].mxu0 %v352
        %v442 = vpop.f32.mrb[0].mxu0
        %v443 = vadd.f32 0.0, %v442
        %v444 = vpop.f32.mrb[0].mxu0
        %445 = vmatprep.mubr.f32.mxu0 0.0
        %446 = vmatmul.mubr.f32.gmra.mrb[0].mxu0 %v353
        %v447 = vpop.f32.mrb[0].mxu0
        %v448 = vadd.f32 0.0, %v447
        %v449 = vpop.f32.mrb[0].mxu0
        %450 = vmatprep.mubr.f32.mxu0 0.0
        %451 = vmatmul.mubr.f32.gmra.mrb[0].mxu0 %v354
        %v452 = vpop.f32.mrb[0].mxu0
        %v453 = vadd.f32 0.0, %v452
        %v454 = vpop.f32.mrb[0].mxu0
        %455 = vmatprep.mubr.f32.mxu0 0.0
        %456 = vmatmul.mubr.f32.gmra.mrb[0].mxu0 %v355
        %v457 = vpop.f32.mrb[0].mxu0
        %v458 = vadd.f32 0.0, %v457
        %v459 = vpop.f32.mrb[0].mxu0
        %460 = vmatprep.mubr.f32.mxu0 0.0
        %461 = vmatmul.mubr.f32.gmra.mrb[0].mxu0 %v356
        %v462 = vpop.f32.mrb[0].mxu0
        %v463 = vadd.f32 0.0, %v462
        %v464 = vpop.f32.mrb[0].mxu0
        %465 = vmatprep.mubr.f32.mxu0 0.0
        %466 = vmatmul.mubr.f32.gmra.mrb[0].mxu0 %v357
        %v467 = vpop.f32.mrb[0].mxu0
        %v468 = vadd.f32 0.0, %v467
        %v469 = vpop.f32.mrb[0].mxu0
        %470 = vmatprep.mubr.f32.mxu0 0.0
        %471 = vmatmul.mubr.f32.gmra.mrb[0].mxu0 %v358
        %v472 = vpop.f32.mrb[0].mxu0
        %v473 = vadd.f32 0.0, %v472
        %v474 = vpop.f32.mrb[0].mxu0
        %475 = vmatprep.mubr.f32.mxu0 0.0
        %476 = vmatmul.mubr.f32.gmra.mrb[0].mxu0 %v359
        %v477 = vpop.f32.mrb[0].mxu0
        %v478 = vadd.f32 0.0, %v477
        %v479 = vpop.f32.mrb[0].mxu0
        %480 = vdwg.mxu0
        %485 = vrot.lane.b32.xlu0 %v448, 64
        %v486 = vpop.permute.xlu0 %485
        %487 = vrot.lane.b32.xlu0 %v453, 64
        %v488 = vpop.permute.xlu0 %487
        %489 = vrot.lane.b32.xlu0 %v458, 64
        %v490 = vpop.permute.xlu0 %489
        %491 = vrot.lane.b32.xlu0 %v463, 64
        %v492 = vpop.permute.xlu0 %491
        %499 = vrot.lane.b32.xlu0 %v468, 64
        %v500 = vpop.permute.xlu0 %499
        %501 = vrot.lane.b32.xlu0 %v473, 64
        %v502 = vpop.permute.xlu0 %501
        %vm505 = vcmask 523264
        %v506 = vsel %vm505, %v443, %v486
        %v507 = vsel %vm505, %v448, %v488
        %v508 = vsel %vm505, %v453, %v490
        %v509 = vsel %vm505, %v458, %v492
        %v510 = vsel %vm505, %v463, %v500
        %v511 = vsel %vm505, %v468, %v502
        %v512 = vld [vmem:[#allocation2] sm:$0xff]
        %v513 = vld [vmem:[#allocation2 + $0x8] sm:$0xff]
        %v514 = vld [vmem:[#allocation2 + $0x10] sm:$0xff]
        %v515 = vld [vmem:[#allocation2 + $0x18] sm:$0xff]
        %v516 = vld [vmem:[#allocation2 + $0x20] sm:$0xff]
        %v517 = vld [vmem:[#allocation2 + $0x28] sm:$0xff]
        %v518 = vld [vmem:[#allocation2 + $0x30] sm:$0xff]
        %v519 = vld [vmem:[#allocation2 + $0x38] sm:$0xff]
        %v520 = vld [vmem:[#allocation2 + $0x40] sm:$0xff]
        %v521 = vld [vmem:[#allocation2 + $0x48] sm:$0xff]
        %v522 = vld [vmem:[#allocation2 + $0x50] sm:$0xff]
        %v523 = vld [vmem:[#allocation2 + $0x58] sm:$0xff]
        %v524 = vld [vmem:[#allocation2 + $0x60] sm:$0xff]
        %v525 = vld [vmem:[#allocation2 + $0x68] sm:$0xff]
        %v526 = vld [vmem:[#allocation2 + $0x70] sm:$0xff]
        %v527 = vld [vmem:[#allocation2 + $0x78] sm:$0xff]
        %v528 = vld [vmem:[#allocation2 + $0x80] sm:$0xff]
        %v529 = vld [vmem:[#allocation2 + $0x88] sm:$0xff]
        %v530 = vld [vmem:[#allocation2 + $0x90] sm:$0xff]
        %v531 = vld [vmem:[#allocation2 + $0x98] sm:$0xff]
        %v532 = vld [vmem:[#allocation2 + $0xa0] sm:$0xff]
        %v533 = vld [vmem:[#allocation2 + $0xa8] sm:$0xff]
        %v534 = vld [vmem:[#allocation2 + $0xb0] sm:$0xff]
        %v535 = vld [vmem:[#allocation2 + $0xb8] sm:$0xff]
        %v536 = vld [vmem:[#allocation2 + $0xc0] sm:$0xff]
        %v537 = vld [vmem:[#allocation2 + $0xc8] sm:$0xff]
        %v538 = vld [vmem:[#allocation2 + $0xd0] sm:$0xff]
        %v539 = vld [vmem:[#allocation2 + $0xd8] sm:$0xff]
        %v540 = vld [vmem:[#allocation2 + $0xe0] sm:$0xff]
        %v541 = vld [vmem:[#allocation2 + $0xe8] sm:$0xff]
        %v542 = vld [vmem:[#allocation2 + $0xf0] sm:$0xff]
        %v543 = vld [vmem:[#allocation2 + $0xf8] sm:$0xff]
        %v544 = vld [vmem:[#allocation2 + $0x100] sm:$0xff]
        %v545 = vld [vmem:[#allocation2 + $0x108] sm:$0xff]
        %v546 = vld [vmem:[#allocation2 + $0x110] sm:$0xff]
        %v547 = vld [vmem:[#allocation2 + $0x118] sm:$0xff]
        %v548 = vld [vmem:[#allocation2 + $0x120] sm:$0xff]
        %v549 = vld [vmem:[#allocation2 + $0x128] sm:$0xff]
        %v550 = vld [vmem:[#allocation2 + $0x130] sm:$0xff]
        %v551 = vld [vmem:[#allocation2 + $0x138] sm:$0xff]
        %v552 = vsel %vm505, %v463, 0
        %v554 = vsel %vm505, %v468, 0
        %v556 = vsel %vm505, %v473, 0
        %v559 = vsel %vm505, %v478, 0
        %561 = vmatprep.subr.mxu0 0.0
        %562 = vmatpush1.msra.mxu0 %v512
        %563 = vmatprep.subr.mxu0 0.0
        %564 = vmatpush1.msra.mxu0 %v513
        %565 = vmatprep.subr.mxu0 0.0
        %566 = vmatpush1.msra.mxu0 %v514
        %567 = vmatprep.subr.mxu0 0.0
        %568 = vmatpush1.msra.mxu0 %v515
        %569 = vmatprep.subr.mxu0 0.0
        %570 = vmatpush1.msra.mxu0 %v516
        %571 = vmatprep.subr.mxu0 0.0
        %572 = vmatpush1.msra.mxu0 %v517
        %573 = vmatprep.subr.mxu0 0.0
        %574 = vmatpush1.msra.mxu0 %v518
        %575 = vmatprep.subr.mxu0 0.0
        %576 = vmatpush1.msra.mxu0 %v519
        %577 = vmatprep.subr.mxu0 0.0
        %578 = vmatpush1.msra.mxu0 %v520
        %579 = vmatprep.subr.mxu0 0.0
        %580 = vmatpush1.msra.mxu0 %v521
        %581 = vmatprep.subr.mxu0 0.0
        %582 = vmatpush1.msra.mxu0 %v522
        %583 = vmatprep.subr.mxu0 0.0
        %584 = vmatpush1.msra.mxu0 %v523
        %585 = vmatprep.subr.mxu0 0.0
        %586 = vmatpush1.msra.mxu0 %v524
        %587 = vmatprep.subr.mxu0 0.0
        %588 = vmatpush1.msra.mxu0 %v525
        %589 = vmatprep.subr.mxu0 0.0
        %590 = vmatpush1.msra.mxu0 %v526
        %591 = vmatprep.subr.mxu0 0.0
        %592 = vmatpush1.msra.mxu0 %v527
        %593 = vmatprep.subr.mxu0 0.0
        %594 = vmatpush1.msra.mxu0 %v528
        %595 = vmatprep.subr.mxu0 0.0
        %596 = vmatpush1.msra.mxu0 %v529
        %597 = vmatprep.subr.mxu0 0.0
        %598 = vmatpush1.msra.mxu0 %v530
        %599 = vmatprep.subr.mxu0 0.0
        %600 = vmatpush1.msra.mxu0 %v531
        %601 = vmatprep.subr.mxu0 0.0
        %602 = vmatpush1.msra.mxu0 %v532
        %603 = vmatprep.subr.mxu0 0.0
        %604 = vmatpush1.msra.mxu0 %v533
        %605 = vmatprep.subr.mxu0 0.0
        %606 = vmatpush1.msra.mxu0 %v534
        %607 = vmatprep.subr.mxu0 0.0
        %608 = vmatpush1.msra.mxu0 %v535
        %609 = vmatprep.subr.mxu0 0.0
        %610 = vmatpush1.msra.mxu0 %v536
        %611 = vmatprep.subr.mxu0 0.0
        %612 = vmatpush1.msra.mxu0 %v537
        %613 = vmatprep.subr.mxu0 0.0
        %614 = vmatpush1.msra.mxu0 %v538
        %615 = vmatprep.subr.mxu0 0.0
        %616 = vmatpush1.msra.mxu0 %v539
        %617 = vmatprep.subr.mxu0 0.0
        %618 = vmatpush1.msra.mxu0 %v540
        %619 = vmatprep.subr.mxu0 0.0
        %620 = vmatpush1.msra.mxu0 %v541
        %621 = vmatprep.subr.mxu0 0.0
        %622 = vmatpush1.msra.mxu0 %v542
        %623 = vmatprep.subr.mxu0 0.0
        %624 = vmatpush1.msra.mxu0 %v543
        %625 = vmatprep.mubr.f32.mxu0 %v508
        %626 = vmatmul.mubr.f32.gmra.mrb[0].mxu0 %v506
        %v627 = vpop.f32.mrb[0].mxu0
        %v628 = vadd.f32 0.0, %v627
        %v629 = vpop.f32.mrb[0].mxu0
        %630 = vmatprep.mubr.f32.mxu0 %v509
        %631 = vmatmul.mubr.f32.gmra.mrb[0].mxu0 %v507
        %v632 = vpop.f32.mrb[0].mxu0
        %v633 = vadd.f32 0.0, %v632
        %v634 = vpop.f32.mrb[0].mxu0
        %635 = vmatprep.mubr.f32.mxu0 %v510
        %636 = vmatmul.mubr.f32.gmra.mrb[0].mxu0 %v508
        %v637 = vpop.f32.mrb[0].mxu0
        %v638 = vadd.f32 0.0, %v637
        %v639 = vpop.f32.mrb[0].mxu0
        %640 = vmatprep.mubr.f32.mxu0 %v511
        %641 = vmatmul.mubr.f32.gmra.mrb[0].mxu0 %v509
        %v642 = vpop.f32.mrb[0].mxu0
        %v643 = vadd.f32 0.0, %v642
        %v644 = vpop.f32.mrb[0].mxu0
        %645 = vdwg.mxu0
        %646 = vmatprep.subr.mxu0 0.0
        %647 = vmatpush1.msra.mxu0 %v544
        %648 = vmatprep.subr.mxu0 0.0
        %649 = vmatpush1.msra.mxu0 %v545
        %650 = vmatprep.subr.mxu0 0.0
        %651 = vmatpush1.msra.mxu0 %v546
        %652 = vmatprep.subr.mxu0 0.0
        %653 = vmatpush1.msra.mxu0 %v547
        %654 = vmatprep.subr.mxu0 0.0
        %655 = vmatpush1.msra.mxu0 %v548
        %656 = vmatprep.subr.mxu0 0.0
        %657 = vmatpush1.msra.mxu0 %v549
        %658 = vmatprep.subr.mxu0 0.0
        %659 = vmatpush1.msra.mxu0 %v550
        %660 = vmatprep.subr.mxu0 0.0
        %661 = vmatpush1.msra.mxu0 %v551
        %662 = vmatprep.subr.mxu0 0.0
        %663 = vmatpush1.msra.mxu0 0.0
        %664 = vmatprep.subr.mxu0 0.0
        %665 = vmatpush1.msra.mxu0 0.0
        %666 = vmatprep.subr.mxu0 0.0
        %667 = vmatpush1.msra.mxu0 0.0
        %668 = vmatprep.subr.mxu0 0.0
        %669 = vmatpush1.msra.mxu0 0.0
        %670 = vmatprep.subr.mxu0 0.0
        %671 = vmatpush1.msra.mxu0 0.0
        %672 = vmatprep.subr.mxu0 0.0
        %673 = vmatpush1.msra.mxu0 0.0
        %674 = vmatprep.subr.mxu0 0.0
        %675 = vmatpush1.msra.mxu0 0.0
        %676 = vmatprep.subr.mxu0 0.0
        %677 = vmatpush1.msra.mxu0 0.0
        %678 = vmatprep.subr.mxu0 0.0
        %679 = vmatpush1.msra.mxu0 0.0
        %680 = vmatprep.subr.mxu0 0.0
        %681 = vmatpush1.msra.mxu0 0.0
        %682 = vmatprep.subr.mxu0 0.0
        %683 = vmatpush1.msra.mxu0 0.0
        %684 = vmatprep.subr.mxu0 0.0
        %685 = vmatpush1.msra.mxu0 0.0
        %686 = vmatprep.subr.mxu0 0.0
        %687 = vmatpush1.msra.mxu0 0.0
        %688 = vmatprep.subr.mxu0 0.0
        %689 = vmatpush1.msra.mxu0 0.0
        %690 = vmatprep.subr.mxu0 0.0
        %691 = vmatpush1.msra.mxu0 0.0
        %692 = vmatprep.subr.mxu0 0.0
        %693 = vmatpush1.msra.mxu0 0.0
        %694 = vmatprep.subr.mxu0 0.0
        %695 = vmatpush1.msra.mxu0 0.0
        %696 = vmatprep.subr.mxu0 0.0
        %697 = vmatpush1.msra.mxu0 0.0
        %698 = vmatprep.subr.mxu0 0.0
        %699 = vmatpush1.msra.mxu0 0.0
        %700 = vmatprep.subr.mxu0 0.0
        %701 = vmatpush1.msra.mxu0 0.0
        %702 = vmatprep.subr.mxu0 0.0
        %703 = vmatpush1.msra.mxu0 0.0
        %704 = vmatprep.subr.mxu0 0.0
        %705 = vmatpush1.msra.mxu0 0.0
        %706 = vmatprep.subr.mxu0 0.0
        %707 = vmatpush1.msra.mxu0 0.0
        %708 = vmatprep.subr.mxu0 0.0
        %709 = vmatpush1.msra.mxu0 0.0
        %710 = vmatprep.mubr.f32.mxu0 0.0
        %711 = vmatmul.mubr.f32.gmra.mrb[0].mxu0 %v552
        %v712 = vpop.f32.mrb[0].mxu0
        %v713 = vadd.f32 %v628, %v712
        %v714 = vpop.f32.mrb[0].mxu0
        %715 = vmatprep.mubr.f32.mxu0 0.0
        %716 = vmatmul.mubr.f32.gmra.mrb[0].mxu0 %v554
        %v717 = vpop.f32.mrb[0].mxu0
        %v718 = vadd.f32 %v633, %v717
        %v719 = vpop.f32.mrb[0].mxu0
        %720 = vmatprep.mubr.f32.mxu0 0.0
        %721 = vmatmul.mubr.f32.gmra.mrb[0].mxu0 %v556
        %v722 = vpop.f32.mrb[0].mxu0
        %v723 = vadd.f32 %v638, %v722
        %v724 = vpop.f32.mrb[0].mxu0
        %725 = vmatprep.mubr.f32.mxu0 0.0
        %726 = vmatmul.mubr.f32.gmra.mrb[0].mxu0 %v559
        %v727 = vpop.f32.mrb[0].mxu0
        %v728 = vadd.f32 %v643, %v727
        %v729 = vpop.f32.mrb[0].mxu0
        %730 = vdwg.mxu0
        %v731 = vmax.f32 %v713, %v718
        %v732 = vmax.f32 %v723, %v728
        %v733 = vmax.f32 %v731, %v732
        %v734 = vld [vmem:[%s3] sm:$0x1]
        %v736 = vlaneseq
        %v737 = vshrl.u32 %v736, 7
        %v738 = vsub.s32 0, %v737
        %v739 = vrot.slane %v734, %v738
        %v741 = vadd.f32 %v733, %v739
        %v742 = vmax.f32 %v741, 0.0
        %v743 = vld [vmem:[#allocation5] sm:$0xff]
        %v744 = vld [vmem:[#allocation5 + $0x8] sm:$0xff]
        %v745 = vld [vmem:[#allocation5 + $0x10] sm:$0xff]
        %v746 = vld [vmem:[#allocation5 + $0x18] sm:$0xff]
        %v747 = vld [vmem:[#allocation5 + $0x20] sm:$0xff]
        %v748 = vld [vmem:[#allocation5 + $0x28] sm:$0xff]
        %v749 = vld [vmem:[#allocation5 + $0x30] sm:$0xff]
        %v750 = vld [vmem:[#allocation5 + $0x38] sm:$0xff]
        %v751 = vld [vmem:[#allocation5 + $0x40] sm:$0xff]
        %v752 = vld [vmem:[#allocation5 + $0x48] sm:$0xff]
        %v753 = vld [vmem:[#allocation5 + $0x50] sm:$0xff]
        %v754 = vld [vmem:[#allocation5 + $0x58] sm:$0xff]
        %v755 = vld [vmem:[#allocation5 + $0x60] sm:$0xff]
        %v756 = vld [vmem:[#allocation5 + $0x68] sm:$0xff]
        %v757 = vld [vmem:[#allocation5 + $0x70] sm:$0xff]
        %v758 = vld [vmem:[#allocation5 + $0x78] sm:$0xff]
        %v759 = vld [vmem:[#allocation5 + $0x80] sm:$0xff]
        %v760 = vld [vmem:[#allocation5 + $0x88] sm:$0xff]
        %v761 = vld [vmem:[#allocation5 + $0x90] sm:$0xff]
        %v762 = vld [vmem:[#allocation5 + $0x98] sm:$0xff]
        %v763 = vld [vmem:[#allocation5 + $0xa0] sm:$0xff]
        %v764 = vld [vmem:[#allocation5 + $0xa8] sm:$0xff]
        %v765 = vld [vmem:[#allocation5 + $0xb0] sm:$0xff]
        %v766 = vld [vmem:[#allocation5 + $0xb8] sm:$0xff]
        %v767 = vld [vmem:[#allocation5 + $0xc0] sm:$0xff]
        %v768 = vld [vmem:[#allocation5 + $0xc8] sm:$0xff]
        %v769 = vld [vmem:[#allocation5 + $0xd0] sm:$0xff]
        %v770 = vld [vmem:[#allocation5 + $0xd8] sm:$0xff]
        %v771 = vld [vmem:[#allocation5 + $0xe0] sm:$0xff]
        %v772 = vld [vmem:[#allocation5 + $0xe8] sm:$0xff]
        %v773 = vld [vmem:[#allocation5 + $0xf0] sm:$0xff]
        %v774 = vld [vmem:[#allocation5 + $0xf8] sm:$0xff]
        %v775 = vld [vmem:[%s5] sm:$0x3]
        %v777 = vlaneseq
        %v778 = vshrl.u32 %v777, 7
        %v779 = vsub.s32 0, %v778
        %v780 = vrot.slane %v775, %v779
        %v781 = vlaneseq
        %v782 = vshrl.u32 %v781, 7
        %v783 = vsub.s32 1, %v782
        %v784 = vrot.slane %v775, %v783
        %787 = vmatprep.subr.mxu0 %v744
        %788 = vmatpush1.msra.mxu0 %v743
        %789 = vmatprep.subr.mxu0 %v746
        %790 = vmatpush1.msra.mxu0 %v745
        %791 = vmatprep.subr.mxu0 %v748
        %792 = vmatpush1.msra.mxu0 %v747
        %793 = vmatprep.subr.mxu0 %v750
        %794 = vmatpush1.msra.mxu0 %v749
        %795 = vmatprep.subr.mxu0 %v752
        %796 = vmatpush1.msra.mxu0 %v751
        %797 = vmatprep.subr.mxu0 %v754
        %798 = vmatpush1.msra.mxu0 %v753
        %799 = vmatprep.subr.mxu0 %v756
        %800 = vmatpush1.msra.mxu0 %v755
        %801 = vmatprep.subr.mxu0 %v758
        %802 = vmatpush1.msra.mxu0 %v757
        %803 = vmatprep.subr.mxu0 %v760
        %804 = vmatpush1.msra.mxu0 %v759
        %805 = vmatprep.subr.mxu0 %v762
        %806 = vmatpush1.msra.mxu0 %v761
        %807 = vmatprep.subr.mxu0 %v764
        %808 = vmatpush1.msra.mxu0 %v763
        %809 = vmatprep.subr.mxu0 %v766
        %810 = vmatpush1.msra.mxu0 %v765
        %811 = vmatprep.subr.mxu0 %v768
        %812 = vmatpush1.msra.mxu0 %v767
        %813 = vmatprep.subr.mxu0 %v770
        %814 = vmatpush1.msra.mxu0 %v769
        %815 = vmatprep.subr.mxu0 %v772
        %816 = vmatpush1.msra.mxu0 %v771
        %817 = vmatprep.subr.mxu0 %v774
        %818 = vmatpush1.msra.mxu0 %v773
        %819 = vmatprep.subr.mxu0 0.0
        %820 = vmatpush1.msra.mxu0 0.0
        %821 = vmatprep.subr.mxu0 0.0
        %822 = vmatpush1.msra.mxu0 0.0
        %823 = vmatprep.subr.mxu0 0.0
        %824 = vmatpush1.msra.mxu0 0.0
        %825 = vmatprep.subr.mxu0 0.0
        %826 = vmatpush1.msra.mxu0 0.0
        %827 = vmatprep.subr.mxu0 0.0
        %828 = vmatpush1.msra.mxu0 0.0
        %829 = vmatprep.subr.mxu0 0.0
        %830 = vmatpush1.msra.mxu0 0.0
        %831 = vmatprep.subr.mxu0 0.0
        %832 = vmatpush1.msra.mxu0 0.0
        %833 = vmatprep.subr.mxu0 0.0
        %834 = vmatpush1.msra.mxu0 0.0
        %835 = vmatprep.subr.mxu0 0.0
        %836 = vmatpush1.msra.mxu0 0.0
        %837 = vmatprep.subr.mxu0 0.0
        %838 = vmatpush1.msra.mxu0 0.0
        %839 = vmatprep.subr.mxu0 0.0
        %840 = vmatpush1.msra.mxu0 0.0
        %841 = vmatprep.subr.mxu0 0.0
        %842 = vmatpush1.msra.mxu0 0.0
        %843 = vmatprep.subr.mxu0 0.0
        %844 = vmatpush1.msra.mxu0 0.0
        %845 = vmatprep.subr.mxu0 0.0
        %846 = vmatpush1.msra.mxu0 0.0
        %847 = vmatprep.subr.mxu0 0.0
        %848 = vmatpush1.msra.mxu0 0.0
        %849 = vmatprep.subr.mxu0 0.0
        %850 = vmatpush1.msra.mxu0 0.0
        %851 = vmatprep.mubr.f32.mxu0 0.0
        %852 = vmatmul.mubr.f32.gmra.mrb[0].mxu0 %v742
        %v853 = vpop.f32.mrb[0].mxu0
        %v854 = vadd.f32 %v780, %v853
        %v855 = vpop.f32.mrb[0].mxu0
        %v856 = vadd.f32 %v784, %v855
        %857 = vdwg.mxu0
        %v858 = vmax.f32 %v854, 0.0
        %v859 = vxor.u32 %v856, 2147483648
        %v860 = vmul.f32 %v859, 1.442695
        %v861 = vpow.pop %v860
        %v862 = vadd.f32 %v861, 1.0
        %v863 = vrcp.pop %v862
        %v864 = vmul.f32 1.0, %v863
        %v865 = vsub.f32 %v858, %v742
        %v866 = vmul.f32 %v864, %v865
        %v867 = vadd.f32 %v742, %v866
        %868 = vst [vmem:[%s272] sm:$0xff] %v867
        %s869 = sand.u32 %s161, 1
        %s870 = scalar_lea.sflag [#allocation4], %s869
        %s871 = sand.u32 %s161, 1
        %s872 = smul.addr %s871, 8
        %s873 = scalar_lea.vmem [#allocation7], %s872
        // Predicated region
        $region53: #{tpu_custom_call.1} parent=43 // pred_check
          %p874 = pneg %p171
        $region54: #{tpu_custom_call.1} parent=43 // pred_check_branch
          %876 = sbr.rel (%p874) target = $region56
        $region55: #{tpu_custom_call.1} parent=43 // pred_region
          %s878 = ssub.s32 128, 128
          %879 = vsyncadd %s870, %s878
          %s880 = smul.addr %s22, 128
          %s881 = scalar_lea.hbm %s6, %s880
          %s883 = sshll.u32 %s873, 4
          %s884 = int_to_ptr.vmem [resolvable:$true] %s883
          %886 = dma.vmem_to_hbm [thread:$0]  %s884, 128, %s881, %s870
        $region56: #{tpu_custom_call.1} parent=43 // pred_fallthru
          _
      $region44: #{tpu_custom_call.1} parent=5 // pred_fallthru
        _
      %p887 = scmp.le.s32.totalorder 2, %s17
      // Predicated region
      $region57: #{tpu_custom_call.1} parent=5 // pred_check
        %p888 = pneg %p887
      $region58: #{tpu_custom_call.1} parent=5 // pred_check_branch
        %890 = sbr.rel (%p888) target = $region60
      $region59: #{tpu_custom_call.1} parent=5 // pred_region
        %s891 = ssub.s32 %s17, 2
        // Predicated region
        $region61: #{tpu_custom_call.1} parent=59 // pred_check
          %p892 = pneg %p177
        $region62: #{tpu_custom_call.1} parent=59 // pred_check_branch
          %894 = sbr.rel (%p892) target = $region64
        $region63: #{tpu_custom_call.1} parent=59 // pred_region
          %s895 = sand.u32 %s162, 1
          %s896 = scalar_lea.sflag [#allocation4], %s895
          %s897 = sand.u32 %s162, 1
          %s898 = smul.addr %s897, 8
          %s899 = scalar_lea.vmem [#allocation7], %s898
          %900 = dma.done %s896, 128
        $region64: #{tpu_custom_call.1} parent=59 // pred_fallthru
          _
      $region60: #{tpu_custom_call.1} parent=5 // pred_fallthru
        _
    $region6: #{tpu_custom_call.1} parent=1 // loop_footer
      %s21 = sadd.s32 1, %s17
    $region7: #{tpu_custom_call.1} parent=1 // loop_footer_branch
      %16 = sbr.rel target = $region3
    $region8: #{tpu_custom_call.1} parent=1 // loop_exit
      _
    %901 = vsyncpa [#allocation3], 1
    %s902 = scalar_lea.sflag [#allocation3], 1
    %903 = vsyncpa %s902, 1
    %904 = vsyncpa [#allocation6], 1
    %905 = vsyncpa [#allocation4], 1
    %s906 = scalar_lea.sflag [#allocation4], 1
    %907 = vsyncpa %s906, 1

</llo_original>
